<compile_context>
chip_gen: v7x
topology: tpu7x:2x2x1
jax: 0.10.0
libtpu: 0.0.40
codegen_flags: <defaults>
</compile_context>

<pallas_src>
import functools

import jax
import jax.numpy as jnp
from jax.experimental import pallas as pl
from jax.experimental.pallas import tpu as pltpu


# ----------------------------------------------------------------------------
# Mode-block sizing: MB is a multiple of 128 (lane width); keep >= 2 grid steps
# when there are enough modes so both TensorCores / megacore can be used.
# ----------------------------------------------------------------------------
def _pick_mode_block(nm):
    n128 = pl.cdiv(nm, 128)           # number of 128-lane groups needed
    if n128 >= 8:
        g = 4                          # 512-mode blocks
    elif n128 >= 4:
        g = 2                          # 256-mode blocks
    else:
        g = 1                          # 128-mode blocks
    mb = g * 128
    nmp = pl.cdiv(n128, g) * g * 128   # padded mode count (multiple of mb)
    return mb, nmp


# ----------------------------------------------------------------------------
# Pallas kernel: lane-parallel complex multiply over a block of MB modes.
#   x block : (2, B, Cin, MB)   [0]=re, [1]=im
#   w block : (2, Cin, Cout, MB)
#   o block : (2, B, Cout, MB)
# Modes live on the 128-lane axis; the Cin reduction is a statically-unrolled
# VPU MAC (no MXU for tiny channel counts).
# ----------------------------------------------------------------------------
def _spectral_mul_kernel(x_ref, w_ref, o_ref):
    xr = x_ref[0]                      # (B, Cin, MB)
    xi = x_ref[1]
    wr = w_ref[0]                      # (Cin, Cout, MB)
    wi = w_ref[1]

    b, cin, mb = xr.shape
    cout = wr.shape[1]

    acc_re = jnp.zeros((b, cout, mb), jnp.float32)
    acc_im = jnp.zeros((b, cout, mb), jnp.float32)

    # (a + ib)(c + id) = (ac - bd) + i(ad + bc), accumulated over Cin.
    for i in range(cin):               # Cin is small & static -> unrolled
        xri = xr[:, i:i + 1, :]        # (B, 1, MB)
        xii = xi[:, i:i + 1, :]
        wri = wr[i][None, :, :]        # (1, Cout, MB)
        wii = wi[i][None, :, :]
        acc_re = acc_re + xri * wri - xii * wii
        acc_im = acc_im + xri * wii + xii * wri

    o_ref[0] = acc_re                  # single lane-dense output slab
    o_ref[1] = acc_im


def _spectral_mul_pallas(x_ri, w_ri, mb):
    """x_ri: (2, B, Cin, NMp) f32; w_ri: (2, Cin, Cout, NMp) f32 (NMp % mb == 0).
       Returns (2, B, Cout, NMp) f32 with re at [0] and im at [1]."""
    _, b, cin, nmp = x_ri.shape
    cout = w_ri.shape[2]
    grid = (nmp // mb,)

    x_spec = pl.BlockSpec((2, b, cin, mb), lambda m: (0, 0, 0, m))
    w_spec = pl.BlockSpec((2, cin, cout, mb), lambda m: (0, 0, 0, m))
    o_spec = pl.BlockSpec((2, b, cout, mb), lambda m: (0, 0, 0, m))

    # Double-buffered block footprint; keep headroom and stay within the
    # smallest physical VMEM (v7x: 64 MiB) -> cap at 48 MiB.
    block_bytes = 4 * mb * (2 * b * cin + 2 * cin * cout + 2 * b * cout)
    vmem_limit = int(min(max(2 * block_bytes + (8 << 20), 32 << 20), 48 << 20))

    return pl.pallas_call(
        _spectral_mul_kernel,
        out_shape=jax.ShapeDtypeStruct((2, b, cout, nmp), jnp.float32),
        grid_spec=pltpu.PrefetchScalarGridSpec(
            num_scalar_prefetch=0,
            grid=grid,
            in_specs=[x_spec, w_spec],
            out_specs=o_spec,
        ),
        compiler_params=pltpu.CompilerParams(
            dimension_semantics=("parallel",),
            vmem_limit_bytes=vmem_limit,
        ),
    )(x_ri, w_ri)


# ----------------------------------------------------------------------------
# SpectralConv2d forward
# ----------------------------------------------------------------------------
@functools.partial(jax.jit, static_argnames=("modes1", "modes2"))
def spectral_conv2d(x, w1, w2, *, modes1, modes2):
    """x: (B, H, W, Cin) float32
       w1, w2: (Cin, Cout, modes1, modes2) complex64
       returns: (B, H, W, Cout) float32."""
    B, H, W, Cin = x.shape
    Cout = w1.shape[1]
    m1, m2 = modes1, modes2
    assert m1 <= H // 2, "modes1 must be <= H//2"
    assert m2 <= W // 2 + 1, "modes2 must fit inside the rfft half-spectrum"

    # permute to NCHW and FFT (glue, plain JAX — no Pallas FFT primitive)
    x_nchw = jnp.transpose(x, (0, 3, 1, 2))                    # (B, Cin, H, W)
    x_ft = jnp.fft.rfft2(x_nchw)                               # (B, Cin, H, W//2+1) c64

    # retained mode regions, flattened to a (B, Cin, NM) modes-last layout
    # (no transposes: the reshape only merges the trailing (m1, m2) dims)
    reg1 = x_ft[:, :, :m1, :m2].reshape(B, Cin, m1 * m2)
    reg2 = x_ft[:, :, H - m1:, :m2].reshape(B, Cin, m1 * m2)
    x_modes = jnp.concatenate([reg1, reg2], axis=-1)           # (B, Cin, NM)

    w_modes = jnp.concatenate(
        [w1.reshape(Cin, Cout, m1 * m2), w2.reshape(Cin, Cout, m1 * m2)],
        axis=-1)                                               # (Cin, Cout, NM)

    nm = 2 * m1 * m2
    mb, nmp = _pick_mode_block(nm)
    pad = nmp - nm

    def split_stack_pad(z):
        zr = jnp.real(z).astype(jnp.float32)
        zi = jnp.imag(z).astype(jnp.float32)
        zs = jnp.stack([zr, zi], axis=0)                       # (2, ..., NM)
        if pad:
            cfg = [(0, 0)] * (zs.ndim - 1) + [(0, pad)]
            zs = jnp.pad(zs, cfg)
        return zs

    x_ri = split_stack_pad(x_modes)                            # (2, B, Cin, NMp)
    w_ri = split_stack_pad(w_modes)                            # (2, Cin, Cout, NMp)

    out = _spectral_mul_pallas(x_ri, w_ri, mb)                 # (2, B, Cout, NMp)

    out_c = (out[0, :, :, :nm] + 1j * out[1, :, :, :nm]).astype(jnp.complex64)
    o1 = out_c[:, :, :m1 * m2].reshape(B, Cout, m1, m2)
    o2 = out_c[:, :, m1 * m2:].reshape(B, Cout, m1, m2)

    # scatter into full spectrum (zeros elsewhere), inverse FFT, back to NHWC
    out_ft = jnp.zeros((B, Cout, H, W // 2 + 1), dtype=jnp.complex64)
    out_ft = out_ft.at[:, :, :m1, :m2].set(o1)
    out_ft = out_ft.at[:, :, H - m1:, :m2].set(o2)

    y = jnp.fft.irfft2(out_ft, s=(H, W))                       # (B, Cout, H, W)
    return jnp.transpose(y, (0, 2, 3, 1)).astype(jnp.float32)  # (B, H, W, Cout)


# ----------------------------------------------------------------------------
# Pure-JAX reference (mirrors the PyTorch forward exactly)
# ----------------------------------------------------------------------------
def spectral_conv2d_ref(x, w1, w2, modes1, modes2):
    B, H, W, Cin = x.shape
    Cout = w1.shape[1]
    x_nchw = jnp.transpose(x, (0, 3, 1, 2))
    x_ft = jnp.fft.rfft2(x_nchw)
    out_ft = jnp.zeros((B, Cout, H, W // 2 + 1), dtype=jnp.complex64)
    out_ft = out_ft.at[:, :, :modes1, :modes2].set(
        jnp.einsum('bixy,ioxy->boxy', x_ft[:, :, :modes1, :modes2], w1))
    out_ft = out_ft.at[:, :, H - modes1:, :modes2].set(
        jnp.einsum('bixy,ioxy->boxy', x_ft[:, :, H - modes1:, :modes2], w2))
    y = jnp.fft.irfft2(out_ft, s=(H, W))
    return jnp.transpose(y, (0, 2, 3, 1)).astype(jnp.float32)


if __name__ == "__main__":
    B, H, W = 2, 16, 16
    Cin, Cout = 4, 4
    modes1, modes2 = 4, 4
    scale = 1.0 / (Cin * Cout)

    key = jax.random.PRNGKey(0)
    kx, kw1r, kw1i, kw2r, kw2i = jax.random.split(key, 5)

    x = jax.random.normal(kx, (B, H, W, Cin), dtype=jnp.float32)

    # weights ~ scale * U[0,1) complex, deterministic from PRNGKey(0)
    w1 = (scale * jax.random.uniform(kw1r, (Cin, Cout, modes1, modes2))
          + 1j * scale * jax.random.uniform(kw1i, (Cin, Cout, modes1, modes2))
          ).astype(jnp.complex64)
    w2 = (scale * jax.random.uniform(kw2r, (Cin, Cout, modes1, modes2))
          + 1j * scale * jax.random.uniform(kw2i, (Cin, Cout, modes1, modes2))
          ).astype(jnp.complex64)

    y = spectral_conv2d(x, w1, w2, modes1=modes1, modes2=modes2)
    y = jax.block_until_ready(y)

    y_ref = spectral_conv2d_ref(x, w1, w2, modes1, modes2)
    assert y.shape == (B, H, W, Cout), y.shape
    assert jnp.allclose(y, y_ref, atol=1e-5, rtol=1e-5), "mismatch vs reference"

    print("KERNEL_OK")
</pallas_src>

<mosaic_0001>
module attributes {stable_mosaic.version = 11 : i64} {
  func.func @_spectral_mul_kernel(%arg0: i32, %arg1: memref<2x2x4x128xf32, #tpu.memory_space<vmem>>, %arg2: memref<2x4x4x128xf32, #tpu.memory_space<vmem>>, %arg3: memref<2x2x4x128xf32, #tpu.memory_space<vmem>>) attributes {dimension_semantics = [#tpu.dimension_semantics<parallel>], iteration_bounds = array<i64: 1>, scalar_prefetch = 0 : i64, scratch_operands = 0 : i64, tpu.core_type = #tpu.core_type<tc>, window_params = [{transform_indices = @transform_0, window_bounds = array<i64: 2, 2, 4, 128>}, {transform_indices = @transform_1, window_bounds = array<i64: 2, 4, 4, 128>}, {transform_indices = @transform_2, window_bounds = array<i64: 2, 2, 4, 128>}]} {
    %c0 = arith.constant 0 : index
    %c0_0 = arith.constant 0 : index
    %c0_1 = arith.constant 0 : index
    %c0_2 = arith.constant 0 : index
    %0 = vector.load %arg1[%c0, %c0_0, %c0_1, %c0_2] : memref<2x2x4x128xf32, #tpu.memory_space<vmem>>, vector<1x2x4x128xf32>
    %1 = vector.shape_cast %0 : vector<1x2x4x128xf32> to vector<2x4x128xf32>
    %c1 = arith.constant 1 : index
    %c0_3 = arith.constant 0 : index
    %c0_4 = arith.constant 0 : index
    %c0_5 = arith.constant 0 : index
    %2 = vector.load %arg1[%c1, %c0_3, %c0_4, %c0_5] : memref<2x2x4x128xf32, #tpu.memory_space<vmem>>, vector<1x2x4x128xf32>
    %3 = vector.shape_cast %2 : vector<1x2x4x128xf32> to vector<2x4x128xf32>
    %c0_6 = arith.constant 0 : index
    %c0_7 = arith.constant 0 : index
    %c0_8 = arith.constant 0 : index
    %c0_9 = arith.constant 0 : index
    %4 = vector.load %arg2[%c0_6, %c0_7, %c0_8, %c0_9] : memref<2x4x4x128xf32, #tpu.memory_space<vmem>>, vector<1x4x4x128xf32>
    %5 = vector.shape_cast %4 : vector<1x4x4x128xf32> to vector<4x4x128xf32>
    %c1_10 = arith.constant 1 : index
    %c0_11 = arith.constant 0 : index
    %c0_12 = arith.constant 0 : index
    %c0_13 = arith.constant 0 : index
    %6 = vector.load %arg2[%c1_10, %c0_11, %c0_12, %c0_13] : memref<2x4x4x128xf32, #tpu.memory_space<vmem>>, vector<1x4x4x128xf32>
    %7 = vector.shape_cast %6 : vector<1x4x4x128xf32> to vector<4x4x128xf32>
    %cst = arith.constant 0.000000e+00 : f32
    %8 = vector.broadcast %cst : f32 to vector<2x4x128xf32>
    %cst_14 = arith.constant 0.000000e+00 : f32
    %9 = vector.broadcast %cst_14 : f32 to vector<2x4x128xf32>
    %10 = vector.extract_strided_slice %1 {offsets = [0, 0, 0], sizes = [2, 1, 128], strides = [1, 1, 1]} : vector<2x4x128xf32> to vector<2x1x128xf32>
    %11 = vector.extract_strided_slice %3 {offsets = [0, 0, 0], sizes = [2, 1, 128], strides = [1, 1, 1]} : vector<2x4x128xf32> to vector<2x1x128xf32>
    %12 = vector.extract_strided_slice %5 {offsets = [0, 0, 0], sizes = [1, 4, 128], strides = [1, 1, 1]} : vector<4x4x128xf32> to vector<1x4x128xf32>
    %13 = vector.shape_cast %12 : vector<1x4x128xf32> to vector<4x128xf32>
    %14 = vector.shape_cast %13 : vector<4x128xf32> to vector<1x4x128xf32>
    %15 = vector.extract_strided_slice %7 {offsets = [0, 0, 0], sizes = [1, 4, 128], strides = [1, 1, 1]} : vector<4x4x128xf32> to vector<1x4x128xf32>
    %16 = vector.shape_cast %15 : vector<1x4x128xf32> to vector<4x128xf32>
    %17 = vector.shape_cast %16 : vector<4x128xf32> to vector<1x4x128xf32>
    %18 = vector.broadcast %10 : vector<2x1x128xf32> to vector<2x4x128xf32>
    %19 = vector.broadcast %14 : vector<1x4x128xf32> to vector<2x4x128xf32>
    %20 = arith.mulf %18, %19 : vector<2x4x128xf32>
    %21 = arith.addf %8, %20 : vector<2x4x128xf32>
    %22 = vector.broadcast %11 : vector<2x1x128xf32> to vector<2x4x128xf32>
    %23 = vector.broadcast %17 : vector<1x4x128xf32> to vector<2x4x128xf32>
    %24 = arith.mulf %22, %23 : vector<2x4x128xf32>
    %25 = arith.subf %21, %24 : vector<2x4x128xf32>
    %26 = vector.broadcast %10 : vector<2x1x128xf32> to vector<2x4x128xf32>
    %27 = vector.broadcast %17 : vector<1x4x128xf32> to vector<2x4x128xf32>
    %28 = arith.mulf %26, %27 : vector<2x4x128xf32>
    %29 = arith.addf %9, %28 : vector<2x4x128xf32>
    %30 = vector.broadcast %11 : vector<2x1x128xf32> to vector<2x4x128xf32>
    %31 = vector.broadcast %14 : vector<1x4x128xf32> to vector<2x4x128xf32>
    %32 = arith.mulf %30, %31 : vector<2x4x128xf32>
    %33 = arith.addf %29, %32 : vector<2x4x128xf32>
    %34 = vector.extract_strided_slice %1 {offsets = [0, 1, 0], sizes = [2, 1, 128], strides = [1, 1, 1]} : vector<2x4x128xf32> to vector<2x1x128xf32>
    %35 = vector.extract_strided_slice %3 {offsets = [0, 1, 0], sizes = [2, 1, 128], strides = [1, 1, 1]} : vector<2x4x128xf32> to vector<2x1x128xf32>
    %36 = vector.extract_strided_slice %5 {offsets = [1, 0, 0], sizes = [1, 4, 128], strides = [1, 1, 1]} : vector<4x4x128xf32> to vector<1x4x128xf32>
    %37 = vector.shape_cast %36 : vector<1x4x128xf32> to vector<4x128xf32>
    %38 = vector.shape_cast %37 : vector<4x128xf32> to vector<1x4x128xf32>
    %39 = vector.extract_strided_slice %7 {offsets = [1, 0, 0], sizes = [1, 4, 128], strides = [1, 1, 1]} : vector<4x4x128xf32> to vector<1x4x128xf32>
    %40 = vector.shape_cast %39 : vector<1x4x128xf32> to vector<4x128xf32>
    %41 = vector.shape_cast %40 : vector<4x128xf32> to vector<1x4x128xf32>
    %42 = vector.broadcast %34 : vector<2x1x128xf32> to vector<2x4x128xf32>
    %43 = vector.broadcast %38 : vector<1x4x128xf32> to vector<2x4x128xf32>
    %44 = arith.mulf %42, %43 : vector<2x4x128xf32>
    %45 = arith.addf %25, %44 : vector<2x4x128xf32>
    %46 = vector.broadcast %35 : vector<2x1x128xf32> to vector<2x4x128xf32>
    %47 = vector.broadcast %41 : vector<1x4x128xf32> to vector<2x4x128xf32>
    %48 = arith.mulf %46, %47 : vector<2x4x128xf32>
    %49 = arith.subf %45, %48 : vector<2x4x128xf32>
    %50 = vector.broadcast %34 : vector<2x1x128xf32> to vector<2x4x128xf32>
    %51 = vector.broadcast %41 : vector<1x4x128xf32> to vector<2x4x128xf32>
    %52 = arith.mulf %50, %51 : vector<2x4x128xf32>
    %53 = arith.addf %33, %52 : vector<2x4x128xf32>
    %54 = vector.broadcast %35 : vector<2x1x128xf32> to vector<2x4x128xf32>
    %55 = vector.broadcast %38 : vector<1x4x128xf32> to vector<2x4x128xf32>
    %56 = arith.mulf %54, %55 : vector<2x4x128xf32>
    %57 = arith.addf %53, %56 : vector<2x4x128xf32>
    %58 = vector.extract_strided_slice %1 {offsets = [0, 2, 0], sizes = [2, 1, 128], strides = [1, 1, 1]} : vector<2x4x128xf32> to vector<2x1x128xf32>
    %59 = vector.extract_strided_slice %3 {offsets = [0, 2, 0], sizes = [2, 1, 128], strides = [1, 1, 1]} : vector<2x4x128xf32> to vector<2x1x128xf32>
    %60 = vector.extract_strided_slice %5 {offsets = [2, 0, 0], sizes = [1, 4, 128], strides = [1, 1, 1]} : vector<4x4x128xf32> to vector<1x4x128xf32>
    %61 = vector.shape_cast %60 : vector<1x4x128xf32> to vector<4x128xf32>
    %62 = vector.shape_cast %61 : vector<4x128xf32> to vector<1x4x128xf32>
    %63 = vector.extract_strided_slice %7 {offsets = [2, 0, 0], sizes = [1, 4, 128], strides = [1, 1, 1]} : vector<4x4x128xf32> to vector<1x4x128xf32>
    %64 = vector.shape_cast %63 : vector<1x4x128xf32> to vector<4x128xf32>
    %65 = vector.shape_cast %64 : vector<4x128xf32> to vector<1x4x128xf32>
    %66 = vector.broadcast %58 : vector<2x1x128xf32> to vector<2x4x128xf32>
    %67 = vector.broadcast %62 : vector<1x4x128xf32> to vector<2x4x128xf32>
    %68 = arith.mulf %66, %67 : vector<2x4x128xf32>
    %69 = arith.addf %49, %68 : vector<2x4x128xf32>
    %70 = vector.broadcast %59 : vector<2x1x128xf32> to vector<2x4x128xf32>
    %71 = vector.broadcast %65 : vector<1x4x128xf32> to vector<2x4x128xf32>
    %72 = arith.mulf %70, %71 : vector<2x4x128xf32>
    %73 = arith.subf %69, %72 : vector<2x4x128xf32>
    %74 = vector.broadcast %58 : vector<2x1x128xf32> to vector<2x4x128xf32>
    %75 = vector.broadcast %65 : vector<1x4x128xf32> to vector<2x4x128xf32>
    %76 = arith.mulf %74, %75 : vector<2x4x128xf32>
    %77 = arith.addf %57, %76 : vector<2x4x128xf32>
    %78 = vector.broadcast %59 : vector<2x1x128xf32> to vector<2x4x128xf32>
    %79 = vector.broadcast %62 : vector<1x4x128xf32> to vector<2x4x128xf32>
    %80 = arith.mulf %78, %79 : vector<2x4x128xf32>
    %81 = arith.addf %77, %80 : vector<2x4x128xf32>
    %82 = vector.extract_strided_slice %1 {offsets = [0, 3, 0], sizes = [2, 1, 128], strides = [1, 1, 1]} : vector<2x4x128xf32> to vector<2x1x128xf32>
    %83 = vector.extract_strided_slice %3 {offsets = [0, 3, 0], sizes = [2, 1, 128], strides = [1, 1, 1]} : vector<2x4x128xf32> to vector<2x1x128xf32>
    %84 = vector.extract_strided_slice %5 {offsets = [3, 0, 0], sizes = [1, 4, 128], strides = [1, 1, 1]} : vector<4x4x128xf32> to vector<1x4x128xf32>
    %85 = vector.shape_cast %84 : vector<1x4x128xf32> to vector<4x128xf32>
    %86 = vector.shape_cast %85 : vector<4x128xf32> to vector<1x4x128xf32>
    %87 = vector.extract_strided_slice %7 {offsets = [3, 0, 0], sizes = [1, 4, 128], strides = [1, 1, 1]} : vector<4x4x128xf32> to vector<1x4x128xf32>
    %88 = vector.shape_cast %87 : vector<1x4x128xf32> to vector<4x128xf32>
    %89 = vector.shape_cast %88 : vector<4x128xf32> to vector<1x4x128xf32>
    %90 = vector.broadcast %82 : vector<2x1x128xf32> to vector<2x4x128xf32>
    %91 = vector.broadcast %86 : vector<1x4x128xf32> to vector<2x4x128xf32>
    %92 = arith.mulf %90, %91 : vector<2x4x128xf32>
    %93 = arith.addf %73, %92 : vector<2x4x128xf32>
    %94 = vector.broadcast %83 : vector<2x1x128xf32> to vector<2x4x128xf32>
    %95 = vector.broadcast %89 : vector<1x4x128xf32> to vector<2x4x128xf32>
    %96 = arith.mulf %94, %95 : vector<2x4x128xf32>
    %97 = arith.subf %93, %96 : vector<2x4x128xf32>
    %98 = vector.broadcast %82 : vector<2x1x128xf32> to vector<2x4x128xf32>
    %99 = vector.broadcast %89 : vector<1x4x128xf32> to vector<2x4x128xf32>
    %100 = arith.mulf %98, %99 : vector<2x4x128xf32>
    %101 = arith.addf %81, %100 : vector<2x4x128xf32>
    %102 = vector.broadcast %83 : vector<2x1x128xf32> to vector<2x4x128xf32>
    %103 = vector.broadcast %86 : vector<1x4x128xf32> to vector<2x4x128xf32>
    %104 = arith.mulf %102, %103 : vector<2x4x128xf32>
    %105 = arith.addf %101, %104 : vector<2x4x128xf32>
    %c0_15 = arith.constant 0 : index
    %c0_16 = arith.constant 0 : index
    %c0_17 = arith.constant 0 : index
    %c0_18 = arith.constant 0 : index
    %106 = vector.load %arg3[%c0_15, %c0_16, %c0_17, %c0_18] : memref<2x2x4x128xf32, #tpu.memory_space<vmem>>, vector<1x2x4x128xf32>
    %107 = vector.shape_cast %106 : vector<1x2x4x128xf32> to vector<2x4x128xf32>
    %108 = vector.shape_cast %97 : vector<2x4x128xf32> to vector<1x2x4x128xf32>
    tpu.vector_store %arg3[%c0_15, %c0_16, %c0_17, %c0_18], %108 {strides = array<i32>} : memref<2x2x4x128xf32, #tpu.memory_space<vmem>>, vector<1x2x4x128xf32>,
    %c1_19 = arith.constant 1 : index
    %c0_20 = arith.constant 0 : index
    %c0_21 = arith.constant 0 : index
    %c0_22 = arith.constant 0 : index
    %109 = vector.load %arg3[%c1_19, %c0_20, %c0_21, %c0_22] : memref<2x2x4x128xf32, #tpu.memory_space<vmem>>, vector<1x2x4x128xf32>
    %110 = vector.shape_cast %109 : vector<1x2x4x128xf32> to vector<2x4x128xf32>
    %111 = vector.shape_cast %105 : vector<2x4x128xf32> to vector<1x2x4x128xf32>
    tpu.vector_store %arg3[%c1_19, %c0_20, %c0_21, %c0_22], %111 {strides = array<i32>} : memref<2x2x4x128xf32, #tpu.memory_space<vmem>>, vector<1x2x4x128xf32>,
    return
  }
  func.func @transform_0(%arg0: i32) -> (i32, i32, i32, i32) {
    %c0_i32 = arith.constant 0 : i32
    %c0_i32_0 = arith.constant 0 : i32
    %c0_i32_1 = arith.constant 0 : i32
    %c0_i32_2 = arith.constant 0 : i32
    return %c0_i32, %c0_i32_0, %c0_i32_1, %arg0 : i32, i32, i32, i32
  }
  func.func @transform_1(%arg0: i32) -> (i32, i32, i32, i32) {
    %c0_i32 = arith.constant 0 : i32
    %c0_i32_0 = arith.constant 0 : i32
    %c0_i32_1 = arith.constant 0 : i32
    %c0_i32_2 = arith.constant 0 : i32
    return %c0_i32, %c0_i32_0, %c0_i32_1, %arg0 : i32, i32, i32, i32
  }
  func.func @transform_2(%arg0: i32) -> (i32, i32, i32, i32) {
    %c0_i32 = arith.constant 0 : i32
    %c0_i32_0 = arith.constant 0 : i32
    %c0_i32_1 = arith.constant 0 : i32
    %c0_i32_2 = arith.constant 0 : i32
    return %c0_i32, %c0_i32_0, %c0_i32_1, %arg0 : i32, i32, i32, i32
  }
}

</mosaic_0001>

<llo_original>
// kernel: custom-call
$region0: #{custom-call}
  %s0 = inlined_call_operand.hbm [shape: c64[4,4,4,4], index: 0, kind: input, shape index: {}]
  %s1 = inlined_call_operand.vmem [shape: f32[4,4,4,4], index: 1, kind: output, shape index: {}]
  $region1: #{custom-call} parent=0
    #allocation0 [shape = 's32[1]{0}', space=sflag, size = 0x4, scoped, tag = 'scoped memory for custom-call']
    %2 = vsyncpa [#allocation0], 0
    %s3 = sshll.u32 %s1, 4
    %s4 = int_to_ptr.vmem [resolvable:$true] %s3
    %6 = dma.hbm_to_vmem [thread:$0]  %s0, 1024, %s4, [#allocation0]
    %7 = dma.done [#allocation0], 1024
    %8 = vsyncpa [#allocation0], 1

// kernel: custom-call.1
$region0: #{custom-call.1}
  %s0 = inlined_call_operand.hbm [shape: c64[4,4,4,4], index: 0, kind: input, shape index: {}]
  %s1 = inlined_call_operand.vmem [shape: f32[4,4,4,4], index: 1, kind: output, shape index: {}]
  %s2 = scalar_lea.hbm %s0, 1024
  $region1: #{custom-call.1} parent=0
    #allocation0 [shape = 's32[1]{0}', space=sflag, size = 0x4, scoped, tag = 'scoped memory for custom-call.1']
    %3 = vsyncpa [#allocation0], 0
    %s4 = sshll.u32 %s1, 4
    %s5 = int_to_ptr.vmem [resolvable:$true] %s4
    %7 = dma.hbm_to_vmem [thread:$0]  %s2, 1024, %s5, [#allocation0]
    %8 = dma.done [#allocation0], 1024
    %9 = vsyncpa [#allocation0], 1

// kernel: spectral_conv2d.1
$region0: #{spectral_conv2d.1}
  #allocation0 [shape = 'u32[]', space=smem, size = 0x4, offset = 0x4, fixed_abs, tag = 'smem constant byte address 0x4 - core index']
  #allocation1 [shape = 'u32[144,128]{1,0:T(1,128)}', space=vmem, size = 0x12000, scoped, tag = 'internal scratch']
  %s0 = inlined_call_operand.vmem [shape: f32[2,2,4,128], index: 0, kind: input, shape index: {}]
  %s1 = inlined_call_operand.vmem [shape: f32[2,4,4,128], index: 1, kind: input, shape index: {}]
  %s2 = inlined_call_operand.vmem [shape: f32[2,2,4,128], index: 2, kind: output, shape index: {}]
  %s3 = sld [smem:[#allocation0]]
  $region18: #{spectral_conv2d.1} parent=0
    _
  %s5 = ssub.s32 1, %s3
  %s6 = scalar_select 0, %s5, %s3
  // Predicated region
  $region2: #{spectral_conv2d.1} parent=0 // pred_check
    _
  $region3: #{spectral_conv2d.1} parent=0 // pred_check_branch
    %8 = sbr.rel (0) target = $region5
  $region4: #{spectral_conv2d.1} parent=0 // pred_region
    _
  $region5: #{spectral_conv2d.1} parent=0 // pred_fallthru
    _
  // Predicated region
  $region6: #{spectral_conv2d.1} parent=0 // pred_check
    _
  $region7: #{spectral_conv2d.1} parent=0 // pred_check_branch
    %10 = sbr.rel (0) target = $region9
  $region8: #{spectral_conv2d.1} parent=0 // pred_region
    _
  $region9: #{spectral_conv2d.1} parent=0 // pred_fallthru
    _
  %v11 = vld [vmem:[%s0] sm:$0xf]
  %v12 = vld [vmem:[%s0 + $0x4] sm:$0xf]
  %s13 = scalar_lea.vmem %s0, 8
  %v14 = vld [vmem:[%s13] sm:$0xf]
  %v15 = vld [vmem:[%s13 + $0x4] sm:$0xf]
  %v16 = vld [vmem:[%s1] sm:$0xf]
  %v17 = vld [vmem:[%s1 + $0x4] sm:$0xf]
  %v18 = vld [vmem:[%s1 + $0x8] sm:$0xf]
  %v19 = vld [vmem:[%s1 + $0xc] sm:$0xf]
  %s20 = scalar_lea.vmem %s1, 16
  %v21 = vld [vmem:[%s20] sm:$0xf]
  %v22 = vld [vmem:[%s20 + $0x4] sm:$0xf]
  %v23 = vld [vmem:[%s20 + $0x8] sm:$0xf]
  %v24 = vld [vmem:[%s20 + $0xc] sm:$0xf]
  %v25 = vlaneseq
  %v26 = vshrl.u32 %v25, 7
  %v27 = vsub.s32 0, %v26
  %v28 = vrot.slane %v11, %v27
  %v29 = vlaneseq
  %v30 = vshrl.u32 %v29, 7
  %v31 = vsub.s32 0, %v30
  %v32 = vrot.slane %v12, %v31
  %v33 = vmul.f32 %v28, %v16
  %v34 = vmul.f32 %v32, %v16
  %v35 = vadd.f32 %v33, 0.0
  %v36 = vadd.f32 %v34, 0.0
  %v37 = vlaneseq
  %v38 = vshrl.u32 %v37, 7
  %v39 = vsub.s32 0, %v38
  %v40 = vrot.slane %v14, %v39
  %v41 = vlaneseq
  %v42 = vshrl.u32 %v41, 7
  %v43 = vsub.s32 0, %v42
  %v44 = vrot.slane %v15, %v43
  %v45 = vmul.f32 %v40, %v21
  %v46 = vmul.f32 %v44, %v21
  %v47 = vsub.f32 %v35, %v45
  %v48 = vsub.f32 %v36, %v46
  %v49 = vmul.f32 %v28, %v21
  %v50 = vmul.f32 %v32, %v21
  %v51 = vadd.f32 %v49, 0.0
  %v52 = vadd.f32 %v50, 0.0
  %v53 = vmul.f32 %v40, %v16
  %v54 = vmul.f32 %v44, %v16
  %v55 = vadd.f32 %v51, %v53
  %v56 = vadd.f32 %v52, %v54
  %v57 = vlaneseq
  %v58 = vshrl.u32 %v57, 7
  %v59 = vsub.s32 1, %v58
  %v60 = vrot.slane %v11, %v59
  %v61 = vlaneseq
  %v62 = vshrl.u32 %v61, 7
  %v63 = vsub.s32 1, %v62
  %v64 = vrot.slane %v12, %v63
  %v65 = vmul.f32 %v60, %v17
  %v66 = vmul.f32 %v64, %v17
  %v67 = vadd.f32 %v47, %v65
  %v68 = vadd.f32 %v48, %v66
  %v69 = vlaneseq
  %v70 = vshrl.u32 %v69, 7
  %v71 = vsub.s32 1, %v70
  %v72 = vrot.slane %v14, %v71
  %v73 = vlaneseq
  %v74 = vshrl.u32 %v73, 7
  %v75 = vsub.s32 1, %v74
  %v76 = vrot.slane %v15, %v75
  %v77 = vmul.f32 %v72, %v22
  %v78 = vmul.f32 %v76, %v22
  %v79 = vsub.f32 %v67, %v77
  %v80 = vsub.f32 %v68, %v78
  %v81 = vmul.f32 %v60, %v22
  %v82 = vmul.f32 %v64, %v22
  %v83 = vadd.f32 %v55, %v81
  %v84 = vadd.f32 %v56, %v82
  %v85 = vmul.f32 %v72, %v17
  %v86 = vmul.f32 %v76, %v17
  %v87 = vadd.f32 %v83, %v85
  %v88 = vadd.f32 %v84, %v86
  %v89 = vlaneseq
  %v90 = vshrl.u32 %v89, 7
  %v91 = vsub.s32 2, %v90
  %v92 = vrot.slane %v11, %v91
  %v93 = vlaneseq
  %v94 = vshrl.u32 %v93, 7
  %v95 = vsub.s32 2, %v94
  %v96 = vrot.slane %v12, %v95
  %v97 = vmul.f32 %v92, %v18
  %v98 = vmul.f32 %v96, %v18
  %v99 = vadd.f32 %v79, %v97
  %v100 = vadd.f32 %v80, %v98
  %v101 = vlaneseq
  %v102 = vshrl.u32 %v101, 7
  %v103 = vsub.s32 2, %v102
  %v104 = vrot.slane %v14, %v103
  %v105 = vlaneseq
  %v106 = vshrl.u32 %v105, 7
  %v107 = vsub.s32 2, %v106
  %v108 = vrot.slane %v15, %v107
  %v109 = vmul.f32 %v104, %v23
  %v110 = vmul.f32 %v108, %v23
  %v111 = vsub.f32 %v99, %v109
  %v112 = vsub.f32 %v100, %v110
  %v113 = vmul.f32 %v92, %v23
  %v114 = vmul.f32 %v96, %v23
  %v115 = vadd.f32 %v87, %v113
  %v116 = vadd.f32 %v88, %v114
  %v117 = vmul.f32 %v104, %v18
  %v118 = vmul.f32 %v108, %v18
  %v119 = vadd.f32 %v115, %v117
  %v120 = vadd.f32 %v116, %v118
  %v121 = vlaneseq
  %v122 = vshrl.u32 %v121, 7
  %v123 = vsub.s32 3, %v122
  %v124 = vrot.slane %v11, %v123
  %v125 = vlaneseq
  %v126 = vshrl.u32 %v125, 7
  %v127 = vsub.s32 3, %v126
  %v128 = vrot.slane %v12, %v127
  %v129 = vmul.f32 %v124, %v19
  %v130 = vmul.f32 %v128, %v19
  %v131 = vadd.f32 %v111, %v129
  %v132 = vadd.f32 %v112, %v130
  %v133 = vlaneseq
  %v134 = vshrl.u32 %v133, 7
  %v135 = vsub.s32 3, %v134
  %v136 = vrot.slane %v14, %v135
  %v137 = vlaneseq
  %v138 = vshrl.u32 %v137, 7
  %v139 = vsub.s32 3, %v138
  %v140 = vrot.slane %v15, %v139
  %v141 = vmul.f32 %v136, %v24
  %v142 = vmul.f32 %v140, %v24
  %v143 = vsub.f32 %v131, %v141
  %v144 = vsub.f32 %v132, %v142
  %v145 = vmul.f32 %v124, %v24
  %v146 = vmul.f32 %v128, %v24
  %v147 = vadd.f32 %v119, %v145
  %v148 = vadd.f32 %v120, %v146
  %v149 = vmul.f32 %v136, %v19
  %v150 = vmul.f32 %v140, %v19
  %v151 = vadd.f32 %v147, %v149
  %v152 = vadd.f32 %v148, %v150
  %153 = vst [vmem:[%s2] sm:$0xf] %v143
  %154 = vst [vmem:[%s2 + $0x4] sm:$0xf] %v144
  %s155 = scalar_lea.vmem %s2, 8
  %156 = vst [vmem:[%s155] sm:$0xf] %v151
  %157 = vst [vmem:[%s155 + $0x4] sm:$0xf] %v152
  // Predicated region
  $region10: #{spectral_conv2d.1} parent=0 // pred_check
    _
  $region11: #{spectral_conv2d.1} parent=0 // pred_check_branch
    %159 = sbr.rel (0) target = $region13
  $region12: #{spectral_conv2d.1} parent=0 // pred_region
    _
  $region13: #{spectral_conv2d.1} parent=0 // pred_fallthru
    _
  // Predicated region
  $region14: #{spectral_conv2d.1} parent=0 // pred_check
    _
  $region15: #{spectral_conv2d.1} parent=0 // pred_check_branch
    %161 = sbr.rel (0) target = $region17
  $region16: #{spectral_conv2d.1} parent=0 // pred_region
    _
  $region17: #{spectral_conv2d.1} parent=0 // pred_fallthru
    _

// kernel: reverse.0
$region0: #{reverse.0}
  %s0 = inlined_call_operand.vmem [shape: f32[2,4,16,7], index: 0, kind: input, shape index: {}]
  %s1 = inlined_call_operand.vmem [shape: f32[2,4,16,7], index: 1, kind: output, shape index: {}]
  $region1: #{reverse.0} parent=0
    #allocation0 [shape = 'u8[65536]{0}', space=vmem, size = 0x10000, scoped, tag = 'operand span for operand 0']
    #allocation1 [shape = 'u8[32768]{0}', space=vmem, size = 0x8000, scoped, tag = 'operand span for operand 1']
    %s2 = scalar_lea.vmem [#allocation0], 8
    // Predicated region
    $region2: #{reverse.0} parent=1 // pred_check
      _
    $region3: #{reverse.0} parent=1 // pred_check_branch
      %4 = sbr.rel (0) target = $region5
    $region4: #{reverse.0} parent=1 // pred_region
      // Predicated region
      $region6: #{reverse.0} parent=4 // pred_check
        _
      $region7: #{reverse.0} parent=4 // pred_check_branch
        %6 = sbr.rel (0) target = $region9
      $region8: #{reverse.0} parent=4 // pred_region
        // Predicated region
        $region21: #{reverse.0} parent=8 // pred_check
          _
        $region22: #{reverse.0} parent=8 // pred_check_branch
          %35 = sbr.rel (0) target = $region24
        $region23: #{reverse.0} parent=8 // pred_region
          loop: start=0, step=1, limit=1
          $region25: #{reverse.0} parent=23 // loop_pre_header
            _
          $region26: #{reverse.0} parent=23 // loop_header
            %s37 = sphi 0, %s41
            %p38 = scmp.ge.s32.totalorder %s37, 1
            %s42 = sphi %s0, %s0
            %s43 = sphi %s2, %s2
          $region27: #{reverse.0} parent=23 // loop_header_branch
            %40 = sbr.rel (%p38) target = $region31
          $region28: #{reverse.0} parent=23 // loop_body
            %v44 = vld [vmem:[%s42] sm:$0xff]
            %45 = vst [vmem:[%s43] sm:$0xff] %v44
            %v46 = vld [vmem:[%s42 + $0x8] sm:$0xff]
            %47 = vst [vmem:[%s43 + $0x10] sm:$0xff] %v46
            %v48 = vld [vmem:[%s42 + $0x10] sm:$0xff]
            %49 = vst [vmem:[%s43 + $0x20] sm:$0xff] %v48
            %v50 = vld [vmem:[%s42 + $0x18] sm:$0xff]
            %51 = vst [vmem:[%s43 + $0x30] sm:$0xff] %v50
            %v52 = vld [vmem:[%s42 + $0x20] sm:$0xff]
            %53 = vst [vmem:[%s43 + $0x40] sm:$0xff] %v52
            %v54 = vld [vmem:[%s42 + $0x28] sm:$0xff]
            %55 = vst [vmem:[%s43 + $0x50] sm:$0xff] %v54
            %v56 = vld [vmem:[%s42 + $0x30] sm:$0xff]
            %57 = vst [vmem:[%s43 + $0x60] sm:$0xff] %v56
            %v58 = vld [vmem:[%s42 + $0x38] sm:$0xff]
            %59 = vst [vmem:[%s43 + $0x70] sm:$0xff] %v58
          $region29: #{reverse.0} parent=23 // loop_footer
            %s41 = sadd.s32 1, %s37
          $region30: #{reverse.0} parent=23 // loop_footer_branch
            %36 = sbr.rel target = $region26
          $region31: #{reverse.0} parent=23 // loop_exit
            _
        $region24: #{reverse.0} parent=8 // pred_fallthru
          _
        // Predicated region
        $region32: #{reverse.0} parent=8 // pred_check
          _
        $region33: #{reverse.0} parent=8 // pred_check_branch
          %61 = sbr.rel target = $region35
        $region34: #{reverse.0} parent=8 // pred_region
          _
        $region35: #{reverse.0} parent=8 // pred_fallthru
          _
      $region9: #{reverse.0} parent=4 // pred_fallthru
        _
      // Predicated region
      $region10: #{reverse.0} parent=4 // pred_check
        _
      $region11: #{reverse.0} parent=4 // pred_check_branch
        %8 = sbr.rel target = $region13
      $region12: #{reverse.0} parent=4 // pred_region
        loop: start=0, step=1, limit=1
        $region14: #{reverse.0} parent=12 // loop_pre_header
          _
        $region15: #{reverse.0} parent=12 // loop_header
          %s11 = sphi 0, %s15
          %p12 = scmp.ge.s32.totalorder %s11, 1
          %s16 = sphi %s0, %s0
          %s17 = sphi %s2, %s2
        $region16: #{reverse.0} parent=12 // loop_header_branch
          %14 = sbr.rel (%p12) target = $region20
        $region17: #{reverse.0} parent=12 // loop_body
          %v18 = vld [vmem:[%s16] sm:$0xff]
          %19 = vst [vmem:[%s17] sm:$0xff] %v18
          %v20 = vld [vmem:[%s16 + $0x8] sm:$0xff]
          %21 = vst [vmem:[%s17 + $0x10] sm:$0xff] %v20
          %v22 = vld [vmem:[%s16 + $0x10] sm:$0xff]
          %23 = vst [vmem:[%s17 + $0x20] sm:$0xff] %v22
          %v24 = vld [vmem:[%s16 + $0x18] sm:$0xff]
          %25 = vst [vmem:[%s17 + $0x30] sm:$0xff] %v24
          %v26 = vld [vmem:[%s16 + $0x20] sm:$0xff]
          %27 = vst [vmem:[%s17 + $0x40] sm:$0xff] %v26
          %v28 = vld [vmem:[%s16 + $0x28] sm:$0xff]
          %29 = vst [vmem:[%s17 + $0x50] sm:$0xff] %v28
          %v30 = vld [vmem:[%s16 + $0x30] sm:$0xff]
          %31 = vst [vmem:[%s17 + $0x60] sm:$0xff] %v30
          %v32 = vld [vmem:[%s16 + $0x38] sm:$0xff]
          %33 = vst [vmem:[%s17 + $0x70] sm:$0xff] %v32
        $region18: #{reverse.0} parent=12 // loop_footer
          %s15 = sadd.s32 1, %s11
        $region19: #{reverse.0} parent=12 // loop_footer_branch
          %10 = sbr.rel target = $region15
        $region20: #{reverse.0} parent=12 // loop_exit
          _
      $region13: #{reverse.0} parent=4 // pred_fallthru
        _
    $region5: #{reverse.0} parent=1 // pred_fallthru
      _
    %62 = vnop
    %s63 = scalar_lea.vmem [#allocation0], 7
    %v64 = vld [vmem:[%s63] ss:$-1 sm:$0xff]
    %v65 = vrot.slane %v64, 1
    %66 = vst [vmem:[#allocation1] sm:$0xff] %v65
    %s67 = scalar_lea.vmem [#allocation0], 8
    %s68 = scalar_lea.vmem %s67, 7 [#allocation0]
    %v69 = vld [vmem:[%s68] ss:$-1 sm:$0xff]
    %v70 = vrot.slane %v69, 1
    %v71 = vlaneseq
    %v72 = vshrl.u32 %v71, 7
    %vm73 = vcmp.lt.s32.totalorder %v72, 7
    %74 = vst.msk [vmem:[#allocation1] sm:$0xff] %vm73, %v70
    %s75 = scalar_lea.vmem [#allocation1], 8
    %s76 = scalar_lea.vmem [#allocation0], 16
    %s77 = scalar_lea.vmem %s76, 7 [#allocation0]
    %v78 = vld [vmem:[%s77] ss:$-1 sm:$0xff]
    %v79 = vrot.slane %v78, 1
    %80 = vst [vmem:[%s75] sm:$0xff] %v79
    %s81 = scalar_lea.vmem %s76, 8 [#allocation0]
    %s82 = scalar_lea.vmem %s81, 7 [#allocation0]
    %v83 = vld [vmem:[%s82] ss:$-1 sm:$0xff]
    %v84 = vrot.slane %v83, 1
    %v85 = vlaneseq
    %v86 = vshrl.u32 %v85, 7
    %vm87 = vcmp.lt.s32.totalorder %v86, 7
    %88 = vst.msk [vmem:[%s75] sm:$0xff] %vm87, %v84
    %s89 = scalar_lea.vmem [#allocation1], 16
    %s90 = scalar_lea.vmem [#allocation0], 32
    %s91 = scalar_lea.vmem %s90, 7 [#allocation0]
    %v92 = vld [vmem:[%s91] ss:$-1 sm:$0xff]
    %v93 = vrot.slane %v92, 1
    %94 = vst [vmem:[%s89] sm:$0xff] %v93
    %s95 = scalar_lea.vmem %s90, 8 [#allocation0]
    %s96 = scalar_lea.vmem %s95, 7 [#allocation0]
    %v97 = vld [vmem:[%s96] ss:$-1 sm:$0xff]
    %v98 = vrot.slane %v97, 1
    %v99 = vlaneseq
    %v100 = vshrl.u32 %v99, 7
    %vm101 = vcmp.lt.s32.totalorder %v100, 7
    %102 = vst.msk [vmem:[%s89] sm:$0xff] %vm101, %v98
    %s103 = scalar_lea.vmem [#allocation1], 24
    %s104 = scalar_lea.vmem [#allocation0], 48
    %s105 = scalar_lea.vmem %s104, 7 [#allocation0]
    %v106 = vld [vmem:[%s105] ss:$-1 sm:$0xff]
    %v107 = vrot.slane %v106, 1
    %108 = vst [vmem:[%s103] sm:$0xff] %v107
    %s109 = scalar_lea.vmem %s104, 8 [#allocation0]
    %s110 = scalar_lea.vmem %s109, 7 [#allocation0]
    %v111 = vld [vmem:[%s110] ss:$-1 sm:$0xff]
    %v112 = vrot.slane %v111, 1
    %v113 = vlaneseq
    %v114 = vshrl.u32 %v113, 7
    %vm115 = vcmp.lt.s32.totalorder %v114, 7
    %116 = vst.msk [vmem:[%s103] sm:$0xff] %vm115, %v112
    %s117 = scalar_lea.vmem [#allocation1], 32
    %s118 = scalar_lea.vmem [#allocation0], 64
    %s119 = scalar_lea.vmem %s118, 7 [#allocation0]
    %v120 = vld [vmem:[%s119] ss:$-1 sm:$0xff]
    %v121 = vrot.slane %v120, 1
    %122 = vst [vmem:[%s117] sm:$0xff] %v121
    %s123 = scalar_lea.vmem %s118, 8 [#allocation0]
    %s124 = scalar_lea.vmem %s123, 7 [#allocation0]
    %v125 = vld [vmem:[%s124] ss:$-1 sm:$0xff]
    %v126 = vrot.slane %v125, 1
    %v127 = vlaneseq
    %v128 = vshrl.u32 %v127, 7
    %vm129 = vcmp.lt.s32.totalorder %v128, 7
    %130 = vst.msk [vmem:[%s117] sm:$0xff] %vm129, %v126
    %s131 = scalar_lea.vmem [#allocation1], 40
    %s132 = scalar_lea.vmem [#allocation0], 80
    %s133 = scalar_lea.vmem %s132, 7 [#allocation0]
    %v134 = vld [vmem:[%s133] ss:$-1 sm:$0xff]
    %v135 = vrot.slane %v134, 1
    %136 = vst [vmem:[%s131] sm:$0xff] %v135
    %s137 = scalar_lea.vmem %s132, 8 [#allocation0]
    %s138 = scalar_lea.vmem %s137, 7 [#allocation0]
    %v139 = vld [vmem:[%s138] ss:$-1 sm:$0xff]
    %v140 = vrot.slane %v139, 1
    %v141 = vlaneseq
    %v142 = vshrl.u32 %v141, 7
    %vm143 = vcmp.lt.s32.totalorder %v142, 7
    %144 = vst.msk [vmem:[%s131] sm:$0xff] %vm143, %v140
    %s145 = scalar_lea.vmem [#allocation1], 48
    %s146 = scalar_lea.vmem [#allocation0], 96
    %s147 = scalar_lea.vmem %s146, 7 [#allocation0]
    %v148 = vld [vmem:[%s147] ss:$-1 sm:$0xff]
    %v149 = vrot.slane %v148, 1
    %150 = vst [vmem:[%s145] sm:$0xff] %v149
    %s151 = scalar_lea.vmem %s146, 8 [#allocation0]
    %s152 = scalar_lea.vmem %s151, 7 [#allocation0]
    %v153 = vld [vmem:[%s152] ss:$-1 sm:$0xff]
    %v154 = vrot.slane %v153, 1
    %v155 = vlaneseq
    %v156 = vshrl.u32 %v155, 7
    %vm157 = vcmp.lt.s32.totalorder %v156, 7
    %158 = vst.msk [vmem:[%s145] sm:$0xff] %vm157, %v154
    %s159 = scalar_lea.vmem [#allocation1], 56
    %s160 = scalar_lea.vmem [#allocation0], 112
    %s161 = scalar_lea.vmem %s160, 7 [#allocation0]
    %v162 = vld [vmem:[%s161] ss:$-1 sm:$0xff]
    %v163 = vrot.slane %v162, 1
    %164 = vst [vmem:[%s159] sm:$0xff] %v163
    %s165 = scalar_lea.vmem %s160, 8 [#allocation0]
    %s166 = scalar_lea.vmem %s165, 7 [#allocation0]
    %v167 = vld [vmem:[%s166] ss:$-1 sm:$0xff]
    %v168 = vrot.slane %v167, 1
    %v169 = vlaneseq
    %v170 = vshrl.u32 %v169, 7
    %vm171 = vcmp.lt.s32.totalorder %v170, 7
    %172 = vst.msk [vmem:[%s159] sm:$0xff] %vm171, %v168
    // Predicated region
    $region36: #{reverse.0} parent=1 // pred_check
      _
    $region37: #{reverse.0} parent=1 // pred_check_branch
      %174 = sbr.rel (0) target = $region39
    $region38: #{reverse.0} parent=1 // pred_region
      // Predicated region
      $region40: #{reverse.0} parent=38 // pred_check
        _
      $region41: #{reverse.0} parent=38 // pred_check_branch
        %176 = sbr.rel (0) target = $region43
      $region42: #{reverse.0} parent=38 // pred_region
        // Predicated region
        $region55: #{reverse.0} parent=42 // pred_check
          _
        $region56: #{reverse.0} parent=42 // pred_check_branch
          %205 = sbr.rel (0) target = $region58
        $region57: #{reverse.0} parent=42 // pred_region
          loop: start=0, step=1, limit=1
          $region59: #{reverse.0} parent=57 // loop_pre_header
            _
          $region60: #{reverse.0} parent=57 // loop_header
            %s207 = sphi 0, %s211
            %p208 = scmp.ge.s32.totalorder %s207, 1
            %s212 = sphi [#allocation1], [#allocation1]
            %s213 = sphi %s1, %s1
          $region61: #{reverse.0} parent=57 // loop_header_branch
            %210 = sbr.rel (%p208) target = $region65
          $region62: #{reverse.0} parent=57 // loop_body
            %v214 = vld [vmem:[%s212] sm:$0xff]
            %215 = vst [vmem:[%s213] sm:$0xff] %v214
            %v216 = vld [vmem:[%s212 + $0x8] sm:$0xff]
            %217 = vst [vmem:[%s213 + $0x8] sm:$0xff] %v216
            %v218 = vld [vmem:[%s212 + $0x10] sm:$0xff]
            %219 = vst [vmem:[%s213 + $0x10] sm:$0xff] %v218
            %v220 = vld [vmem:[%s212 + $0x18] sm:$0xff]
            %221 = vst [vmem:[%s213 + $0x18] sm:$0xff] %v220
            %v222 = vld [vmem:[%s212 + $0x20] sm:$0xff]
            %223 = vst [vmem:[%s213 + $0x20] sm:$0xff] %v222
            %v224 = vld [vmem:[%s212 + $0x28] sm:$0xff]
            %225 = vst [vmem:[%s213 + $0x28] sm:$0xff] %v224
            %v226 = vld [vmem:[%s212 + $0x30] sm:$0xff]
            %227 = vst [vmem:[%s213 + $0x30] sm:$0xff] %v226
            %v228 = vld [vmem:[%s212 + $0x38] sm:$0xff]
            %229 = vst [vmem:[%s213 + $0x38] sm:$0xff] %v228
          $region63: #{reverse.0} parent=57 // loop_footer
            %s211 = sadd.s32 1, %s207
          $region64: #{reverse.0} parent=57 // loop_footer_branch
            %206 = sbr.rel target = $region60
          $region65: #{reverse.0} parent=57 // loop_exit
            _
        $region58: #{reverse.0} parent=42 // pred_fallthru
          _
        // Predicated region
        $region66: #{reverse.0} parent=42 // pred_check
          _
        $region67: #{reverse.0} parent=42 // pred_check_branch
          %231 = sbr.rel target = $region69
        $region68: #{reverse.0} parent=42 // pred_region
          _
        $region69: #{reverse.0} parent=42 // pred_fallthru
          _
      $region43: #{reverse.0} parent=38 // pred_fallthru
        _
      // Predicated region
      $region44: #{reverse.0} parent=38 // pred_check
        _
      $region45: #{reverse.0} parent=38 // pred_check_branch
        %178 = sbr.rel target = $region47
      $region46: #{reverse.0} parent=38 // pred_region
        loop: start=0, step=1, limit=1
        $region48: #{reverse.0} parent=46 // loop_pre_header
          _
        $region49: #{reverse.0} parent=46 // loop_header
          %s181 = sphi 0, %s185
          %p182 = scmp.ge.s32.totalorder %s181, 1
          %s186 = sphi [#allocation1], [#allocation1]
          %s187 = sphi %s1, %s1
        $region50: #{reverse.0} parent=46 // loop_header_branch
          %184 = sbr.rel (%p182) target = $region54
        $region51: #{reverse.0} parent=46 // loop_body
          %v188 = vld [vmem:[%s186] sm:$0xff]
          %189 = vst [vmem:[%s187] sm:$0xff] %v188
          %v190 = vld [vmem:[%s186 + $0x8] sm:$0xff]
          %191 = vst [vmem:[%s187 + $0x8] sm:$0xff] %v190
          %v192 = vld [vmem:[%s186 + $0x10] sm:$0xff]
          %193 = vst [vmem:[%s187 + $0x10] sm:$0xff] %v192
          %v194 = vld [vmem:[%s186 + $0x18] sm:$0xff]
          %195 = vst [vmem:[%s187 + $0x18] sm:$0xff] %v194
          %v196 = vld [vmem:[%s186 + $0x20] sm:$0xff]
          %197 = vst [vmem:[%s187 + $0x20] sm:$0xff] %v196
          %v198 = vld [vmem:[%s186 + $0x28] sm:$0xff]
          %199 = vst [vmem:[%s187 + $0x28] sm:$0xff] %v198
          %v200 = vld [vmem:[%s186 + $0x30] sm:$0xff]
          %201 = vst [vmem:[%s187 + $0x30] sm:$0xff] %v200
          %v202 = vld [vmem:[%s186 + $0x38] sm:$0xff]
          %203 = vst [vmem:[%s187 + $0x38] sm:$0xff] %v202
        $region52: #{reverse.0} parent=46 // loop_footer
          %s185 = sadd.s32 1, %s181
        $region53: #{reverse.0} parent=46 // loop_footer_branch
          %180 = sbr.rel target = $region49
        $region54: #{reverse.0} parent=46 // loop_exit
          _
      $region47: #{reverse.0} parent=38 // pred_fallthru
        _
    $region39: #{reverse.0} parent=1 // pred_fallthru
      _
    %232 = vnop

</llo_original>
